<compile_context>
chip_gen: v7x
topology: tpu7x:2x2x1
jax: 0.10.0
libtpu: 0.0.40
codegen_flags: <defaults>
</compile_context>

<pallas_src>
import functools

import jax
import jax.numpy as jnp
from jax.experimental import pallas as pl
from jax.experimental.pallas import tpu as pltpu


_TARGET_BLOCK_BYTES = 2 * 1024 * 1024   # ~1-4 MiB blocks hit >=85% of HBM roofline
_TINY_OUT_BYTES = 128 * 1024            # below this, XLA pad beats any pallas_call
_ROW_TILE_CAP = 256                     # keep time (lanes) as the wide, dense axis
_VMEM_LIMIT_BYTES = 48 * 1024 * 1024    # safe on v5e/v6e (128 MiB) and v7x (64 MiB)


def _round_up(x: int, m: int) -> int:
    return ((x + m - 1) // m) * m


def _round_down(x: int, m: int) -> int:
    return (x // m) * m


def _pad_copy_kernel(x_ref, o_ref, *, t_in, t_tile):
    """Write one (row_tile, t_tile) output tile per grid step.

    Interior tiles (entirely before t_in): one full-width unmasked copy.
    Boundary / pure-pad tiles: zero every output column >= t_in.  The input
    block for those steps is the clamped last valid input block, so anything
    read past t_in is garbage — the `cols < t_in` mask is what keeps it out of
    the output.  Do not narrow or drop that jnp.where.
    """
    t = pl.program_id(1)
    col0 = t * t_tile

    @pl.when(col0 + t_tile <= t_in)
    def _():
        o_ref[...] = x_ref[...]

    @pl.when(col0 + t_tile > t_in)
    def _():
        cols = col0 + jax.lax.broadcasted_iota(jnp.int32, o_ref.shape, 1)
        x = x_ref[...]
        o_ref[...] = jnp.where(cols < t_in, x, jnp.zeros_like(x))


def _select_tiles(n_rows: int, t_out: int, itemsize: int):
    """Pick (row_tile, t_tile): dtype-aware, ~2 MiB blocks, multi-step grid."""
    # Sublane packing granularity: f32 -> 8, bf16 -> 16, int8/fp8 -> 32.
    sub = max(8, 32 // max(1, itemsize))

    if n_rows <= sub:
        row_tile = n_rows                                  # == full dim (legal)
    else:
        row_tile = min(_ROW_TILE_CAP, _round_down(n_rows, sub))

    # Time tile: multiple of 128, sized so the block hits the byte target;
    # wider cap for sub-32-bit dtypes so block *bytes* (not elements) land in
    # the 1-4 MiB sweet spot.
    t_cap = 4096 if itemsize < 4 else 2048
    t_budget = max(512, _round_down(_TARGET_BLOCK_BYTES // (row_tile * itemsize), 128))
    t_tile = min(t_budget, t_cap, _round_up(t_out, 128))

    # Guarantee >= 2 grid steps (v7x megacore sharding + fetch/writeback overlap).
    if pl.cdiv(n_rows, row_tile) * pl.cdiv(t_out, t_tile) < 2:
        if row_tile >= 2 * sub:
            row_tile = max(sub, _round_down(row_tile // 2, sub))
        elif t_out >= 256:
            t_tile = max(128, _round_up((t_out + 1) // 2, 128))

    return row_tile, t_tile


def causal_padding(x: jax.Array, pad: int = 0) -> jax.Array:
    """Pallas equivalent of F.pad(x, (0, pad)): append `pad` zeros on the last axis."""
    assert pad >= 0
    if pad == 0:
        return x

    orig_shape = x.shape
    t_in = orig_shape[-1]
    t_out = t_in + pad
    out_shape = orig_shape[:-1] + (t_out,)

    n_rows = 1
    for d in orig_shape[:-1]:
        n_rows *= d
    itemsize = jnp.dtype(x.dtype).itemsize

    # Tiny-shape fast path: fixed pallas_call / grid-step overhead and masked
    # narrow stores dominate here on every generation — let XLA pad it.
    if n_rows == 0 or t_out < 128 or n_rows * t_out * itemsize < _TINY_OUT_BYTES:
        cfg = [(0, 0)] * (x.ndim - 1) + [(0, pad)]
        return jnp.pad(x, cfg)

    x2 = x.reshape(n_rows, t_in)
    row_tile, t_tile = _select_tiles(n_rows, t_out, itemsize)
    n_row_tiles = pl.cdiv(n_rows, row_tile)
    n_t_tiles = pl.cdiv(t_out, t_tile)
    n_in_t_tiles = pl.cdiv(t_in, t_tile)

    kernel = functools.partial(_pad_copy_kernel, t_in=t_in, t_tile=t_tile)

    in_specs = [
        pl.BlockSpec(
            (row_tile, t_tile),
            # Clamp so pure-pad output tiles still index a valid input block;
            # the in-kernel mask discards everything past t_in.
            lambda r, t: (r, jnp.minimum(t, n_in_t_tiles - 1)),
        )
    ]
    out_specs = pl.BlockSpec((row_tile, t_tile), lambda r, t: (r, t))

    out2 = pl.pallas_call(
        kernel,
        out_shape=jax.ShapeDtypeStruct((n_rows, t_out), x.dtype),
        grid_spec=pltpu.PrefetchScalarGridSpec(
            num_scalar_prefetch=0,
            grid=(n_row_tiles, n_t_tiles),
            in_specs=in_specs,
            out_specs=out_specs,
        ),
        compiler_params=pltpu.CompilerParams(
            # Every (r, t) writes a disjoint output tile with no accumulation,
            # so both axes are legal to shard across cores.
            dimension_semantics=("parallel", "parallel"),
            vmem_limit_bytes=_VMEM_LIMIT_BYTES,
        ),
    )(x2)

    return out2.reshape(out_shape)


def causal_padding_ref(x: jax.Array, pad: int = 0) -> jax.Array:
    cfg = [(0, 0)] * (x.ndim - 1) + [(0, pad)]
    return jnp.pad(x, cfg)


if __name__ == "__main__":
    key = jax.random.PRNGKey(0)
    k1, k2, k3, k4 = jax.random.split(key, 4)

    # 1) Primary module-sized shape (tiny -> jnp.pad fast path).
    x = jax.random.normal(k1, (2, 4, 16), dtype=jnp.float32)
    out = jax.block_until_ready(causal_padding(x, pad=8))
    ref = causal_padding_ref(x, pad=8)
    assert out.shape == (2, 4, 24), out.shape
    assert out.dtype == x.dtype
    assert jnp.array_equal(out, ref), "mismatch vs reference (fast path)"

    # pad == 0 degenerates to identity.
    out0 = jax.block_until_ready(causal_padding(x, pad=0))
    assert jnp.array_equal(out0, x), "pad=0 must be identity"

    # 2) Pallas path: aligned rows, interior + boundary time tiles.
    x2 = jax.random.normal(k2, (2, 8, 4000), dtype=jnp.float32)
    out2 = jax.block_until_ready(causal_padding(x2, pad=96))
    assert out2.shape == (2, 8, 4096)
    assert jnp.array_equal(out2, causal_padding_ref(x2, pad=96)), "mismatch (f32 tiled)"

    # 3) Pallas path: unaligned row count (overhanging last row block).
    x3 = jax.random.normal(k3, (5, 7, 1000), dtype=jnp.float32)
    out3 = jax.block_until_ready(causal_padding(x3, pad=100))
    assert out3.shape == (5, 7, 1100)
    assert jnp.array_equal(out3, causal_padding_ref(x3, pad=100)), "mismatch (unaligned rows)"

    # 4) Pallas path: bf16 (dtype-aware tiling + 1x1-grid row split).
    x4 = jax.random.normal(k4, (4, 16, 3000), dtype=jnp.bfloat16)
    out4 = jax.block_until_ready(causal_padding(x4, pad=72))
    assert out4.shape == (4, 16, 3072)
    assert jnp.array_equal(out4, causal_padding_ref(x4, pad=72)), "mismatch (bf16)"

    print("KERNEL_OK")
</pallas_src>

<mosaic_0001>
module attributes {stable_mosaic.version = 11 : i64} {
  func.func @_pad_copy_kernel(%arg0: i32, %arg1: i32, %arg2: memref<16x2048xf32, #tpu.memory_space<vmem>>, %arg3: memref<16x2048xf32, #tpu.memory_space<vmem>>) attributes {dimension_semantics = [#tpu.dimension_semantics<parallel>, #tpu.dimension_semantics<parallel>], iteration_bounds = array<i64: 1, 2>, scalar_prefetch = 0 : i64, scratch_operands = 0 : i64, tpu.core_type = #tpu.core_type<tc>, window_params = [{transform_indices = @transform_0, window_bounds = array<i64: 16, 2048>}, {transform_indices = @transform_1, window_bounds = array<i64: 16, 2048>}]} {
    %c2048_i32 = arith.constant 2048 : i32
    %0 = arith.muli %arg1, %c2048_i32 : i32
    %c2048_i32_0 = arith.constant 2048 : i32
    %1 = arith.addi %0, %c2048_i32_0 : i32
    %c4000_i32 = arith.constant 4000 : i32
    %2 = arith.cmpi sle, %1, %c4000_i32 : i32
    %3 = arith.extui %2 : i1 to i32
    %c0_i32 = arith.constant 0 : i32
    %4 = arith.cmpi ne, %3, %c0_i32 : i32
    scf.if %4 {
      %c0 = arith.constant 0 : index
      %c0_4 = arith.constant 0 : index
      %9 = vector.load %arg2[%c0, %c0_4] : memref<16x2048xf32, #tpu.memory_space<vmem>>, vector<16x2048xf32>
      %c0_5 = arith.constant 0 : index
      %c0_6 = arith.constant 0 : index
      %10 = vector.load %arg3[%c0_5, %c0_6] : memref<16x2048xf32, #tpu.memory_space<vmem>>, vector<16x2048xf32>
      tpu.vector_store %arg3[%c0_5, %c0_6], %9 {strides = array<i32>} : memref<16x2048xf32, #tpu.memory_space<vmem>>, vector<16x2048xf32>,
    } else {
    }
    %c2048_i32_1 = arith.constant 2048 : i32
    %5 = arith.addi %0, %c2048_i32_1 : i32
    %c4000_i32_2 = arith.constant 4000 : i32
    %6 = arith.cmpi sgt, %5, %c4000_i32_2 : i32
    %7 = arith.extui %6 : i1 to i32
    %c0_i32_3 = arith.constant 0 : i32
    %8 = arith.cmpi ne, %7, %c0_i32_3 : i32
    scf.if %8 {
      %9 = tpu.iota {dimensions = array<i32: 1>} : vector<16x2048xi32>
      %10 = vector.broadcast %0 : i32 to vector<16x2048xi32>
      %11 = arith.addi %10, %9 : vector<16x2048xi32>
      %c0 = arith.constant 0 : index
      %c0_4 = arith.constant 0 : index
      %12 = vector.load %arg2[%c0, %c0_4] : memref<16x2048xf32, #tpu.memory_space<vmem>>, vector<16x2048xf32>
      %c4000_i32_5 = arith.constant 4000 : i32
      %13 = vector.broadcast %c4000_i32_5 : i32 to vector<16x2048xi32>
      %14 = arith.cmpi slt, %11, %13 : vector<16x2048xi32>
      %cst = arith.constant 0.000000e+00 : f32
      %15 = vector.broadcast %cst : f32 to vector<16x2048xf32>
      %16 = arith.select %14, %12, %15 : vector<16x2048xi1>, vector<16x2048xf32>
      %c0_6 = arith.constant 0 : index
      %c0_7 = arith.constant 0 : index
      %17 = vector.load %arg3[%c0_6, %c0_7] : memref<16x2048xf32, #tpu.memory_space<vmem>>, vector<16x2048xf32>
      tpu.vector_store %arg3[%c0_6, %c0_7], %16 {strides = array<i32>} : memref<16x2048xf32, #tpu.memory_space<vmem>>, vector<16x2048xf32>,
    } else {
    }
    return
  }
  func.func @transform_0(%arg0: i32, %arg1: i32) -> (i32, i32) {
    %c1_i32 = arith.constant 1 : i32
    %0 = arith.minsi %arg1, %c1_i32 : i32
    %c0_i32 = arith.constant 0 : i32
    return %arg0, %0 : i32, i32
  }
  func.func @transform_1(%arg0: i32, %arg1: i32) -> (i32, i32) {
    %c0_i32 = arith.constant 0 : i32
    return %arg0, %arg1 : i32, i32
  }
}

</mosaic_0001>

<llo_original>
// kernel: tpu_custom_call.1
$region0: #{tpu_custom_call.1}
  #allocation0 [shape = 'u32[]', space=smem, size = 0x4, offset = 0x4, fixed_abs, tag = 'smem constant byte address 0x4 - core index']
  #allocation1 [shape = 'u32[144,128]{1,0:T(1,128)}', space=vmem, size = 0x12000, scoped, tag = 'internal scratch']
  %s0 = inlined_call_operand.hbm [shape: f32[16,4000], index: 0, kind: input, shape index: {}]
  %s1 = inlined_call_operand.hbm [shape: f32[16,4096], index: 1, kind: output, shape index: {}]
  %s2 = sld [smem:[#allocation0]]
  $region49: #{tpu_custom_call.1} parent=0
    _
  %s4 = ssub.s32 1, %s2
  %s5 = scalar_select 0, %s4, %s2
  $region1: #{tpu_custom_call.1} parent=0
    #allocation2 [shape = 'u8[262144]{0}', space=vmem, size = 0x40000, scoped, tag = 'input window, operand 0']
    #allocation3 [shape = 's32[2]{0}', space=sflag, size = 0x8, scoped, tag = 'scoped memory for tpu_custom_call.1']
    #allocation4 [shape = 's32[2]{0}', space=sflag, size = 0x8, scoped, tag = 'scoped memory for tpu_custom_call.1']
    #allocation5 [shape = 'u8[262144]{0}', space=vmem, size = 0x40000, scoped, tag = 'output window, operand 0']
    %6 = vsyncpa [#allocation3], 0
    %s7 = scalar_lea.sflag [#allocation3], 1
    %8 = vsyncpa %s7, 0
    %9 = vsyncpa [#allocation4], 0
    %s10 = scalar_lea.sflag [#allocation4], 1
    %11 = vsyncpa %s10, 0
    loop: start=0, step=1, limit=4
    $region2: #{tpu_custom_call.1} parent=1 // loop_pre_header
      _
    $region3: #{tpu_custom_call.1} parent=1 // loop_header
      %s13 = sphi 0, %s17
      %p14 = scmp.ge.s32.totalorder %s13, 4
      %s20 = sphi 0, %s32
      %s21 = sphi 0, %s28
      %s22 = sphi 0, %s20
      %s23 = sphi 0, %s21
      %s24 = sphi 0, %s22
      %s25 = sphi 0, %s23
      %s41 = sphi 0, %s43
      %s44 = sphi 0, %s41
      %s45 = sphi 0, %s44
      %s61 = sphi 0, %s45
      %s69 = sphi 0, %s71
      %s72 = sphi 0, %s69
      %s73 = sphi 0, %s72
      %s89 = sphi 0, %s73
    $region4: #{tpu_custom_call.1} parent=1 // loop_header_branch
      %16 = sbr.rel (%p14) target = $region8
    $region5: #{tpu_custom_call.1} parent=1 // loop_body
      %s18 = ssub.s32 %s13, 1
      %s19 = ssub.s32 %s13, 2
      %s26 = sadd.s32 1, %s21
      %p27 = scmp.ge.s32.totalorder %s26, 2
      %s28 = scalar_select %p27, 0, %s26
      %s29 = sadd.s32 1, %s20
      %s30 = scalar_select %p27, %s29, %s20
      %p31 = scmp.ge.s32.totalorder %s30, 1
      %s32 = scalar_select %p31, 0, %s30
      %p33 = scmp.lt.s32.totalorder %s21, 1
      %s34 = scalar_select %p33, %s21, 1
      %p35 = scmp.lt.s32.totalorder %s28, 1
      %s36 = scalar_select %p35, %s28, 1
      %s37 = ssub.s32 %s20, %s32
      %s38 = ssub.s32 %s34, %s36
      %s39 = sor.u32 %s37, %s38
      %p40 = scmp.eq.s32.totalorder %s39, 0
      %s42 = sadd.s32 %s41, 1
      %s43 = scalar_select %p40, %s41, %s42
      %p46 = pneg %p40
      %p47 = scmp.eq.s32.totalorder %s13, 1
      %p48 = por %p46, %p47
      %p49 = scmp.ne.s32.totalorder %s41, %s44
      %p50 = scmp.eq.s32.totalorder %s13, 0
      %p51 = por %p49, %p50
      %p52 = scmp.ne.s32.totalorder %s41, %s44
      %p53 = scmp.eq.s32.totalorder %s18, 1
      %p54 = por %p52, %p53
      %p55 = scmp.ne.s32.totalorder %s44, %s45
      %p56 = scmp.eq.s32.totalorder %s18, 0
      %p57 = por %p55, %p56
      %p58 = scmp.ne.s32.totalorder %s44, %s45
      %p59 = scmp.eq.s32.totalorder %s19, 1
      %p60 = por %p58, %p59
      %p62 = scmp.ne.s32.totalorder %s45, %s61
      %p63 = scmp.eq.s32.totalorder %s19, 0
      %p64 = por %p62, %p63
      %s65 = ssub.s32 %s20, %s32
      %s66 = ssub.s32 %s21, %s28
      %s67 = sor.u32 %s65, %s66
      %p68 = scmp.eq.s32.totalorder %s67, 0
      %s70 = sadd.s32 %s69, 1
      %s71 = scalar_select %p68, %s69, %s70
      %p74 = pneg %p68
      %p75 = scmp.eq.s32.totalorder %s13, 1
      %p76 = por %p74, %p75
      %p77 = scmp.ne.s32.totalorder %s69, %s72
      %p78 = scmp.eq.s32.totalorder %s13, 0
      %p79 = por %p77, %p78
      %p80 = scmp.ne.s32.totalorder %s69, %s72
      %p81 = scmp.eq.s32.totalorder %s18, 1
      %p82 = por %p80, %p81
      %p83 = scmp.ne.s32.totalorder %s72, %s73
      %p84 = scmp.eq.s32.totalorder %s18, 0
      %p85 = por %p83, %p84
      %p86 = scmp.ne.s32.totalorder %s72, %s73
      %p87 = scmp.eq.s32.totalorder %s19, 1
      %p88 = por %p86, %p87
      %p90 = scmp.ne.s32.totalorder %s73, %s89
      %p91 = scmp.eq.s32.totalorder %s19, 0
      %p92 = por %p90, %p91
      %p93 = scmp.le.s32.totalorder 1, %s13
      %p94 = scmp.lt.s32.totalorder %s13, 3
      %p95 = pnand %p93, %p94
      %p96 = pneg %p95
      // Predicated region
      $region9: #{tpu_custom_call.1} parent=5 // pred_check
        _
      $region10: #{tpu_custom_call.1} parent=5 // pred_check_branch
        %98 = sbr.rel (%p95) target = $region12
      $region11: #{tpu_custom_call.1} parent=5 // pred_region
        %s99 = ssub.s32 %s13, 1
      $region12: #{tpu_custom_call.1} parent=5 // pred_fallthru
        _
      %p100 = scmp.lt.s32.totalorder %s13, 2
      // Predicated region
      $region13: #{tpu_custom_call.1} parent=5 // pred_check
        %p101 = pneg %p100
      $region14: #{tpu_custom_call.1} parent=5 // pred_check_branch
        %103 = sbr.rel (%p101) target = $region16
      $region15: #{tpu_custom_call.1} parent=5 // pred_region
        // Predicated region
        $region17: #{tpu_custom_call.1} parent=15 // pred_check
          %p104 = pneg %p51
        $region18: #{tpu_custom_call.1} parent=15 // pred_check_branch
          %106 = sbr.rel (%p104) target = $region20
        $region19: #{tpu_custom_call.1} parent=15 // pred_region
          %s107 = sand.u32 %s41, 1
          %s108 = scalar_lea.sflag [#allocation3], %s107
          %s109 = sand.u32 %s41, 1
          %s110 = smul.addr %s109, 256
          %s111 = scalar_lea.vmem [#allocation2], %s110
          %p112 = scmp.lt.s32.totalorder %s21, 1
          %s113 = scalar_select %p112, %s21, 1
          %s114 = smul.u32 2, %s20
          %s115 = smul.u32 16, %s113
          %s117 = ssub.s32 4096, 4096
          %118 = vsyncadd %s108, %s117
          %s119 = smul.addr %s114, 32
          %s120 = sadd.s32 %s115, %s119
          %s121 = smul.addr %s120, 128
          %s122 = scalar_lea.hbm %s0, %s121
          %s123 = sshll.u32 %s111, 4
          %s124 = int_to_ptr.vmem [resolvable:$true] %s123
          %129 = dma.hbm_to_vmem [thread:$0]  %s122, 4096, %s124, %s108, 4096, 2048, 128
        $region20: #{tpu_custom_call.1} parent=15 // pred_fallthru
          _
      $region16: #{tpu_custom_call.1} parent=5 // pred_fallthru
        _
      %p130 = scmp.le.s32.totalorder 1, %s13
      %p131 = scmp.lt.s32.totalorder %s13, 3
      %p132 = pnand %p130, %p131
      %p133 = pneg %p132
      // Predicated region
      $region21: #{tpu_custom_call.1} parent=5 // pred_check
        _
      $region22: #{tpu_custom_call.1} parent=5 // pred_check_branch
        %135 = sbr.rel (%p132) target = $region24
      $region23: #{tpu_custom_call.1} parent=5 // pred_region
        %s136 = ssub.s32 %s13, 1
        %s137 = sand.u32 %s44, 1
        %s138 = scalar_lea.sflag [#allocation3], %s137
        %s139 = sand.u32 %s44, 1
        %s140 = smul.addr %s139, 256
        %s141 = scalar_lea.vmem [#allocation2], %s140
        // Predicated region
        $region25: #{tpu_custom_call.1} parent=23 // pred_check
          %p142 = pneg %p57
        $region26: #{tpu_custom_call.1} parent=23 // pred_check_branch
          %144 = sbr.rel (%p142) target = $region28
        $region27: #{tpu_custom_call.1} parent=23 // pred_region
          %145 = dma.done %s138, 4096
        $region28: #{tpu_custom_call.1} parent=23 // pred_fallthru
          _
        %s146 = sand.u32 %s44, 1
        %s147 = scalar_lea.sflag [#allocation3], %s146
        %s148 = sand.u32 %s44, 1
        %s149 = smul.addr %s148, 256
        %s150 = scalar_lea.vmem [#allocation2], %s149
        %p151 = pneg %p57
        %p152 = pneg %p54
        %p153 = pneg %p85
        %p154 = pneg %p82
        %s155 = sand.u32 %s72, 1
        %s156 = scalar_lea.sflag [#allocation4], %s155
        %s157 = sand.u32 %s72, 1
        %s158 = smul.addr %s157, 256
        %s159 = scalar_lea.vmem [#allocation5], %s158
        %p160 = scmp.lt.s32.totalorder %s23, 1
        %s161 = scalar_select %p160, %s23, 1
        %s162 = smul.u32 2, %s22
        %s163 = smul.u32 16, %s161
        %s164 = smul.u32 2, %s22
        %s165 = smul.u32 16, %s23
        %s166 = smul.u32 %s23, 2048
        %s167 = sadd.s32 %s166, 2048
        %p168 = scmp.le.s32.totalorder %s167, 4000
        // Predicated region
        $region29: #{tpu_custom_call.1} parent=23 // pred_check
          %p169 = pneg %p168
        $region30: #{tpu_custom_call.1} parent=23 // pred_check_branch
          %171 = sbr.rel (%p169) target = $region32
        $region31: #{tpu_custom_call.1} parent=23 // pred_region
          %v172 = vld [vmem:[%s141] sm:$0xff]
          %v173 = vld [vmem:[%s141 + $0x8] sm:$0xff]
          %v174 = vld [vmem:[%s141 + $0x10] sm:$0xff]
          %v175 = vld [vmem:[%s141 + $0x18] sm:$0xff]
          %v176 = vld [vmem:[%s141 + $0x20] sm:$0xff]
          %v177 = vld [vmem:[%s141 + $0x28] sm:$0xff]
          %v178 = vld [vmem:[%s141 + $0x30] sm:$0xff]
          %v179 = vld [vmem:[%s141 + $0x38] sm:$0xff]
          %v180 = vld [vmem:[%s141 + $0x40] sm:$0xff]
          %v181 = vld [vmem:[%s141 + $0x48] sm:$0xff]
          %v182 = vld [vmem:[%s141 + $0x50] sm:$0xff]
          %v183 = vld [vmem:[%s141 + $0x58] sm:$0xff]
          %v184 = vld [vmem:[%s141 + $0x60] sm:$0xff]
          %v185 = vld [vmem:[%s141 + $0x68] sm:$0xff]
          %v186 = vld [vmem:[%s141 + $0x70] sm:$0xff]
          %v187 = vld [vmem:[%s141 + $0x78] sm:$0xff]
          %v188 = vld [vmem:[%s141 + $0x80] sm:$0xff]
          %v189 = vld [vmem:[%s141 + $0x88] sm:$0xff]
          %v190 = vld [vmem:[%s141 + $0x90] sm:$0xff]
          %v191 = vld [vmem:[%s141 + $0x98] sm:$0xff]
          %v192 = vld [vmem:[%s141 + $0xa0] sm:$0xff]
          %v193 = vld [vmem:[%s141 + $0xa8] sm:$0xff]
          %v194 = vld [vmem:[%s141 + $0xb0] sm:$0xff]
          %v195 = vld [vmem:[%s141 + $0xb8] sm:$0xff]
          %v196 = vld [vmem:[%s141 + $0xc0] sm:$0xff]
          %v197 = vld [vmem:[%s141 + $0xc8] sm:$0xff]
          %v198 = vld [vmem:[%s141 + $0xd0] sm:$0xff]
          %v199 = vld [vmem:[%s141 + $0xd8] sm:$0xff]
          %v200 = vld [vmem:[%s141 + $0xe0] sm:$0xff]
          %v201 = vld [vmem:[%s141 + $0xe8] sm:$0xff]
          %v202 = vld [vmem:[%s141 + $0xf0] sm:$0xff]
          %v203 = vld [vmem:[%s141 + $0xf8] sm:$0xff]
          %204 = vst [vmem:[%s159] sm:$0xff] %v172
          %205 = vst [vmem:[%s159 + $0x8] sm:$0xff] %v173
          %206 = vst [vmem:[%s159 + $0x10] sm:$0xff] %v174
          %207 = vst [vmem:[%s159 + $0x18] sm:$0xff] %v175
          %208 = vst [vmem:[%s159 + $0x20] sm:$0xff] %v176
          %209 = vst [vmem:[%s159 + $0x28] sm:$0xff] %v177
          %210 = vst [vmem:[%s159 + $0x30] sm:$0xff] %v178
          %211 = vst [vmem:[%s159 + $0x38] sm:$0xff] %v179
          %212 = vst [vmem:[%s159 + $0x40] sm:$0xff] %v180
          %213 = vst [vmem:[%s159 + $0x48] sm:$0xff] %v181
          %214 = vst [vmem:[%s159 + $0x50] sm:$0xff] %v182
          %215 = vst [vmem:[%s159 + $0x58] sm:$0xff] %v183
          %216 = vst [vmem:[%s159 + $0x60] sm:$0xff] %v184
          %217 = vst [vmem:[%s159 + $0x68] sm:$0xff] %v185
          %218 = vst [vmem:[%s159 + $0x70] sm:$0xff] %v186
          %219 = vst [vmem:[%s159 + $0x78] sm:$0xff] %v187
          %220 = vst [vmem:[%s159 + $0x80] sm:$0xff] %v188
          %221 = vst [vmem:[%s159 + $0x88] sm:$0xff] %v189
          %222 = vst [vmem:[%s159 + $0x90] sm:$0xff] %v190
          %223 = vst [vmem:[%s159 + $0x98] sm:$0xff] %v191
          %224 = vst [vmem:[%s159 + $0xa0] sm:$0xff] %v192
          %225 = vst [vmem:[%s159 + $0xa8] sm:$0xff] %v193
          %226 = vst [vmem:[%s159 + $0xb0] sm:$0xff] %v194
          %227 = vst [vmem:[%s159 + $0xb8] sm:$0xff] %v195
          %228 = vst [vmem:[%s159 + $0xc0] sm:$0xff] %v196
          %229 = vst [vmem:[%s159 + $0xc8] sm:$0xff] %v197
          %230 = vst [vmem:[%s159 + $0xd0] sm:$0xff] %v198
          %231 = vst [vmem:[%s159 + $0xd8] sm:$0xff] %v199
          %232 = vst [vmem:[%s159 + $0xe0] sm:$0xff] %v200
          %233 = vst [vmem:[%s159 + $0xe8] sm:$0xff] %v201
          %234 = vst [vmem:[%s159 + $0xf0] sm:$0xff] %v202
          %235 = vst [vmem:[%s159 + $0xf8] sm:$0xff] %v203
        $region32: #{tpu_custom_call.1} parent=23 // pred_fallthru
          _
        %p236 = scmp.gt.s32.totalorder %s167, 4000
        // Predicated region
        $region33: #{tpu_custom_call.1} parent=23 // pred_check
          %p237 = pneg %p236
        $region34: #{tpu_custom_call.1} parent=23 // pred_check_branch
          %239 = sbr.rel (%p237) target = $region36
        $region35: #{tpu_custom_call.1} parent=23 // pred_region
          %v240 = vlaneseq
          %v241 = vand.u32 %v240, 127
          %v242 = vadd.s32 %v241, 128
          %v243 = vadd.s32 %v241, 256
          %v244 = vadd.s32 %v241, 384
          %v245 = vadd.s32 %v241, 512
          %v246 = vadd.s32 %v241, 640
          %v247 = vadd.s32 %v241, 768
          %v248 = vadd.s32 %v241, 896
          %v249 = vadd.s32 %v241, 1024
          %v250 = vadd.s32 %v241, 1152
          %v251 = vadd.s32 %v241, 1280
          %v252 = vadd.s32 %v241, 1408
          %v253 = vadd.s32 %v241, 1536
          %v254 = vadd.s32 %v241, 1664
          %v255 = vadd.s32 %v241, 1792
          %v256 = vadd.s32 %v241, 1920
          %v257 = vstv %s166
          %v258 = vadd.s32 %v257, %v241
          %v259 = vadd.s32 %v257, %v242
          %v260 = vadd.s32 %v257, %v243
          %v261 = vadd.s32 %v257, %v244
          %v262 = vadd.s32 %v257, %v245
          %v263 = vadd.s32 %v257, %v246
          %v264 = vadd.s32 %v257, %v247
          %v265 = vadd.s32 %v257, %v248
          %v266 = vadd.s32 %v257, %v249
          %v267 = vadd.s32 %v257, %v250
          %v268 = vadd.s32 %v257, %v251
          %v269 = vadd.s32 %v257, %v252
          %v270 = vadd.s32 %v257, %v253
          %v271 = vadd.s32 %v257, %v254
          %v272 = vadd.s32 %v257, %v255
          %v273 = vadd.s32 %v257, %v256
          %v274 = vld [vmem:[%s141] sm:$0xff]
          %v275 = vld [vmem:[%s141 + $0x8] sm:$0xff]
          %v276 = vld [vmem:[%s141 + $0x10] sm:$0xff]
          %v277 = vld [vmem:[%s141 + $0x18] sm:$0xff]
          %v278 = vld [vmem:[%s141 + $0x20] sm:$0xff]
          %v279 = vld [vmem:[%s141 + $0x28] sm:$0xff]
          %v280 = vld [vmem:[%s141 + $0x30] sm:$0xff]
          %v281 = vld [vmem:[%s141 + $0x38] sm:$0xff]
          %v282 = vld [vmem:[%s141 + $0x40] sm:$0xff]
          %v283 = vld [vmem:[%s141 + $0x48] sm:$0xff]
          %v284 = vld [vmem:[%s141 + $0x50] sm:$0xff]
          %v285 = vld [vmem:[%s141 + $0x58] sm:$0xff]
          %v286 = vld [vmem:[%s141 + $0x60] sm:$0xff]
          %v287 = vld [vmem:[%s141 + $0x68] sm:$0xff]
          %v288 = vld [vmem:[%s141 + $0x70] sm:$0xff]
          %v289 = vld [vmem:[%s141 + $0x78] sm:$0xff]
          %v290 = vld [vmem:[%s141 + $0x80] sm:$0xff]
          %v291 = vld [vmem:[%s141 + $0x88] sm:$0xff]
          %v292 = vld [vmem:[%s141 + $0x90] sm:$0xff]
          %v293 = vld [vmem:[%s141 + $0x98] sm:$0xff]
          %v294 = vld [vmem:[%s141 + $0xa0] sm:$0xff]
          %v295 = vld [vmem:[%s141 + $0xa8] sm:$0xff]
          %v296 = vld [vmem:[%s141 + $0xb0] sm:$0xff]
          %v297 = vld [vmem:[%s141 + $0xb8] sm:$0xff]
          %v298 = vld [vmem:[%s141 + $0xc0] sm:$0xff]
          %v299 = vld [vmem:[%s141 + $0xc8] sm:$0xff]
          %v300 = vld [vmem:[%s141 + $0xd0] sm:$0xff]
          %v301 = vld [vmem:[%s141 + $0xd8] sm:$0xff]
          %v302 = vld [vmem:[%s141 + $0xe0] sm:$0xff]
          %v303 = vld [vmem:[%s141 + $0xe8] sm:$0xff]
          %v304 = vld [vmem:[%s141 + $0xf0] sm:$0xff]
          %v305 = vld [vmem:[%s141 + $0xf8] sm:$0xff]
          %vm306 = vcmp.lt.s32.totalorder %v258, 4000
          %vm307 = vcmp.lt.s32.totalorder %v259, 4000
          %vm308 = vcmp.lt.s32.totalorder %v260, 4000
          %vm309 = vcmp.lt.s32.totalorder %v261, 4000
          %vm310 = vcmp.lt.s32.totalorder %v262, 4000
          %vm311 = vcmp.lt.s32.totalorder %v263, 4000
          %vm312 = vcmp.lt.s32.totalorder %v264, 4000
          %vm313 = vcmp.lt.s32.totalorder %v265, 4000
          %vm314 = vcmp.lt.s32.totalorder %v266, 4000
          %vm315 = vcmp.lt.s32.totalorder %v267, 4000
          %vm316 = vcmp.lt.s32.totalorder %v268, 4000
          %vm317 = vcmp.lt.s32.totalorder %v269, 4000
          %vm318 = vcmp.lt.s32.totalorder %v270, 4000
          %vm319 = vcmp.lt.s32.totalorder %v271, 4000
          %vm320 = vcmp.lt.s32.totalorder %v272, 4000
          %vm321 = vcmp.lt.s32.totalorder %v273, 4000
          %v322 = vsel %vm306, %v274, 0.0
          %v323 = vsel %vm307, %v275, 0.0
          %v324 = vsel %vm308, %v276, 0.0
          %v325 = vsel %vm309, %v277, 0.0
          %v326 = vsel %vm310, %v278, 0.0
          %v327 = vsel %vm311, %v279, 0.0
          %v328 = vsel %vm312, %v280, 0.0
          %v329 = vsel %vm313, %v281, 0.0
          %v330 = vsel %vm314, %v282, 0.0
          %v331 = vsel %vm315, %v283, 0.0
          %v332 = vsel %vm316, %v284, 0.0
          %v333 = vsel %vm317, %v285, 0.0
          %v334 = vsel %vm318, %v286, 0.0
          %v335 = vsel %vm319, %v287, 0.0
          %v336 = vsel %vm320, %v288, 0.0
          %v337 = vsel %vm321, %v289, 0.0
          %v338 = vsel %vm306, %v290, 0.0
          %v339 = vsel %vm307, %v291, 0.0
          %v340 = vsel %vm308, %v292, 0.0
          %v341 = vsel %vm309, %v293, 0.0
          %v342 = vsel %vm310, %v294, 0.0
          %v343 = vsel %vm311, %v295, 0.0
          %v344 = vsel %vm312, %v296, 0.0
          %v345 = vsel %vm313, %v297, 0.0
          %v346 = vsel %vm314, %v298, 0.0
          %v347 = vsel %vm315, %v299, 0.0
          %v348 = vsel %vm316, %v300, 0.0
          %v349 = vsel %vm317, %v301, 0.0
          %v350 = vsel %vm318, %v302, 0.0
          %v351 = vsel %vm319, %v303, 0.0
          %v352 = vsel %vm320, %v304, 0.0
          %v353 = vsel %vm321, %v305, 0.0
          %354 = vst [vmem:[%s159] sm:$0xff] %v322
          %355 = vst [vmem:[%s159 + $0x8] sm:$0xff] %v323
          %356 = vst [vmem:[%s159 + $0x10] sm:$0xff] %v324
          %357 = vst [vmem:[%s159 + $0x18] sm:$0xff] %v325
          %358 = vst [vmem:[%s159 + $0x20] sm:$0xff] %v326
          %359 = vst [vmem:[%s159 + $0x28] sm:$0xff] %v327
          %360 = vst [vmem:[%s159 + $0x30] sm:$0xff] %v328
          %361 = vst [vmem:[%s159 + $0x38] sm:$0xff] %v329
          %362 = vst [vmem:[%s159 + $0x40] sm:$0xff] %v330
          %363 = vst [vmem:[%s159 + $0x48] sm:$0xff] %v331
          %364 = vst [vmem:[%s159 + $0x50] sm:$0xff] %v332
          %365 = vst [vmem:[%s159 + $0x58] sm:$0xff] %v333
          %366 = vst [vmem:[%s159 + $0x60] sm:$0xff] %v334
          %367 = vst [vmem:[%s159 + $0x68] sm:$0xff] %v335
          %368 = vst [vmem:[%s159 + $0x70] sm:$0xff] %v336
          %369 = vst [vmem:[%s159 + $0x78] sm:$0xff] %v337
          %370 = vst [vmem:[%s159 + $0x80] sm:$0xff] %v338
          %371 = vst [vmem:[%s159 + $0x88] sm:$0xff] %v339
          %372 = vst [vmem:[%s159 + $0x90] sm:$0xff] %v340
          %373 = vst [vmem:[%s159 + $0x98] sm:$0xff] %v341
          %374 = vst [vmem:[%s159 + $0xa0] sm:$0xff] %v342
          %375 = vst [vmem:[%s159 + $0xa8] sm:$0xff] %v343
          %376 = vst [vmem:[%s159 + $0xb0] sm:$0xff] %v344
          %377 = vst [vmem:[%s159 + $0xb8] sm:$0xff] %v345
          %378 = vst [vmem:[%s159 + $0xc0] sm:$0xff] %v346
          %379 = vst [vmem:[%s159 + $0xc8] sm:$0xff] %v347
          %380 = vst [vmem:[%s159 + $0xd0] sm:$0xff] %v348
          %381 = vst [vmem:[%s159 + $0xd8] sm:$0xff] %v349
          %382 = vst [vmem:[%s159 + $0xe0] sm:$0xff] %v350
          %383 = vst [vmem:[%s159 + $0xe8] sm:$0xff] %v351
          %384 = vst [vmem:[%s159 + $0xf0] sm:$0xff] %v352
          %385 = vst [vmem:[%s159 + $0xf8] sm:$0xff] %v353
        $region36: #{tpu_custom_call.1} parent=23 // pred_fallthru
          _
        %s386 = sand.u32 %s72, 1
        %s387 = scalar_lea.sflag [#allocation4], %s386
        %s388 = sand.u32 %s72, 1
        %s389 = smul.addr %s388, 256
        %s390 = scalar_lea.vmem [#allocation5], %s389
        // Predicated region
        $region37: #{tpu_custom_call.1} parent=23 // pred_check
          %p391 = pneg %p82
        $region38: #{tpu_custom_call.1} parent=23 // pred_check_branch
          %393 = sbr.rel (%p391) target = $region40
        $region39: #{tpu_custom_call.1} parent=23 // pred_region
          %s394 = smul.u32 2, %s22
          %s395 = smul.u32 16, %s23
          %s397 = ssub.s32 4096, 4096
          %398 = vsyncadd %s387, %s397
          %s399 = smul.addr %s394, 32
          %s400 = sadd.s32 %s395, %s399
          %s401 = smul.addr %s400, 128
          %s402 = scalar_lea.hbm %s1, %s401
          %s403 = sshll.u32 %s390, 4
          %s404 = int_to_ptr.vmem [resolvable:$true] %s403
          %409 = dma.vmem_to_hbm [thread:$0]  %s404, 4096, %s402, %s387, 2048, 4096, 128
        $region40: #{tpu_custom_call.1} parent=23 // pred_fallthru
          _
      $region24: #{tpu_custom_call.1} parent=5 // pred_fallthru
        _
      %p410 = scmp.le.s32.totalorder 2, %s13
      // Predicated region
      $region41: #{tpu_custom_call.1} parent=5 // pred_check
        %p411 = pneg %p410
      $region42: #{tpu_custom_call.1} parent=5 // pred_check_branch
        %413 = sbr.rel (%p411) target = $region44
      $region43: #{tpu_custom_call.1} parent=5 // pred_region
        %s414 = ssub.s32 %s13, 2
        // Predicated region
        $region45: #{tpu_custom_call.1} parent=43 // pred_check
          %p415 = pneg %p88
        $region46: #{tpu_custom_call.1} parent=43 // pred_check_branch
          %417 = sbr.rel (%p415) target = $region48
        $region47: #{tpu_custom_call.1} parent=43 // pred_region
          %s418 = sand.u32 %s73, 1
          %s419 = scalar_lea.sflag [#allocation4], %s418
          %s420 = sand.u32 %s73, 1
          %s421 = smul.addr %s420, 256
          %s422 = scalar_lea.vmem [#allocation5], %s421
          %423 = dma.done %s419, 4096
        $region48: #{tpu_custom_call.1} parent=43 // pred_fallthru
          _
      $region44: #{tpu_custom_call.1} parent=5 // pred_fallthru
        _
    $region6: #{tpu_custom_call.1} parent=1 // loop_footer
      %s17 = sadd.s32 1, %s13
    $region7: #{tpu_custom_call.1} parent=1 // loop_footer_branch
      %12 = sbr.rel target = $region3
    $region8: #{tpu_custom_call.1} parent=1 // loop_exit
      _
    %424 = vsyncpa [#allocation3], 1
    %s425 = scalar_lea.sflag [#allocation3], 1
    %426 = vsyncpa %s425, 1
    %427 = vsyncpa [#allocation4], 1
    %s428 = scalar_lea.sflag [#allocation4], 1
    %429 = vsyncpa %s428, 1

</llo_original>
